<compile_context>
chip_gen: v5e
topology: v5e:2x2
jax: 0.10.0
libtpu: 0.0.40
codegen_flags: <defaults>
</compile_context>

<pallas_src>
import jax
import jax.numpy as jnp
from jax.experimental import pallas as pl
from jax.experimental.pallas import tpu as pltpu

CIN = 1        # forward() reshapes input to a single channel, so cin == 1
CH = 34        # conv width; with L = 36 -> CH * L2 = 34 * 9 = 306 == Linear in_features
K = 7
STRIDE = 2
PAD = 3


def _conv_out_len(L):
    return (L + 2 * PAD - K) // STRIDE + 1


def _round_up(n, m):
    return (n + m - 1) // m * m


# ---------------------------------------------------------------------------
# Pallas kernel: conv1 -> bias -> ReLU -> conv2 -> bias -> ReLU -> linear.
# ---------------------------------------------------------------------------
def cnn_kernel(x_ref, t1_ref, t2_ref, b1_ref, b2_ref, wl_ref, bl_ref, o_ref):
    # Cast the f32 input tile to bf16 on the VPU (lots of slack); keeps the wrapper
    # from doing a full-batch HBM cast pass.
    xb = x_ref[...].astype(jnp.bfloat16)
    # Conv1d(1, CH, k=7, s=2, p=3) as a bf16 Toeplitz matmul, f32 accumulate,
    # f32 bias broadcast-add on the VPU, ReLU.
    h1 = jnp.dot(xb, t1_ref[...], preferred_element_type=jnp.float32) + b1_ref[...]
    h1 = jnp.maximum(h1, 0.0)
    # Conv1d(CH, CH, k=7, s=2, p=3), same scheme.
    h2 = jnp.dot(h1.astype(jnp.bfloat16), t2_ref[...],
                 preferred_element_type=jnp.float32) + b2_ref[...]
    h2 = jnp.maximum(h2, 0.0)
    # Linear(306, 1) as VPU multiply + XLU lane-reduction (avoids an N=1 MXU pass).
    # The reduce result is relaid out sublane->lane (XLU) so the (1, TB) output
    # block is a lane-dense, unmasked store.
    r = jnp.sum(h2 * wl_ref[...], axis=-1)             # (TB,)
    o_ref[...] = r[None, :] + bl_ref[...]               # (1, TB)


# ---------------------------------------------------------------------------
# One-time parameter lowering (plain JAX): conv weights -> dense Toeplitz ops.
# ---------------------------------------------------------------------------
def make_toeplitz1(w1, L, L1):
    # T1[j, co*L1 + t] = w1[co, 0, j + PAD - STRIDE*t]   (0 if kernel index OOB)
    j = jnp.arange(L)[:, None, None]
    co = jnp.arange(CH)[None, :, None]
    t = jnp.arange(L1)[None, None, :]
    k = j + PAD - STRIDE * t
    valid = (k >= 0) & (k < K)
    kc = jnp.clip(k, 0, K - 1)
    vals = w1[co, 0, kc]                                  # (L, CH, L1)
    return jnp.where(valid, vals, 0.0).reshape(L, CH * L1)


def make_toeplitz2(w2, L1, L2):
    # T2[ci*L1 + j, co*L2 + t] = w2[co, ci, j + PAD - STRIDE*t]   (0 if OOB)
    ci = jnp.arange(CH)[:, None, None, None]
    j = jnp.arange(L1)[None, :, None, None]
    co = jnp.arange(CH)[None, None, :, None]
    t = jnp.arange(L2)[None, None, None, :]
    k = j + PAD - STRIDE * t
    valid = (k >= 0) & (k < K)
    kc = jnp.clip(k, 0, K - 1)
    vals = w2[co, ci, kc]                                 # (CH, L1, CH, L2)
    return jnp.where(valid, vals, 0.0).reshape(CH * L1, CH * L2)


def prepare_operators(params, L):
    """Lower conv weights to dense bf16 Toeplitz operators + f32 bias rows.

    Call this ONCE per set of weights and reuse the result across forward calls
    (rebuilding it per call would dominate launch-side cost for this tiny model).
    """
    L1 = _conv_out_len(L)
    L2 = _conv_out_len(L1)
    assert CH * L2 == 306, "sequence length must make ch * L2 == 306 (Linear in_features)"
    return {
        "t1": make_toeplitz1(params["w1"], L, L1).astype(jnp.bfloat16),   # [L,  F1]
        "t2": make_toeplitz2(params["w2"], L1, L2).astype(jnp.bfloat16),  # [F1, F2]
        "b1": jnp.repeat(params["b1"], L1)[None, :].astype(jnp.float32),  # [1, F1] channel-major
        "b2": jnp.repeat(params["b2"], L2)[None, :].astype(jnp.float32),  # [1, F2] channel-major
        "wl": params["wl"].reshape(1, -1).astype(jnp.float32),            # [1, F2]
        "bl": params["bl"].reshape(1, 1).astype(jnp.float32),             # [1, 1]
    }


# ---------------------------------------------------------------------------
# Batch-tile selection (perf review: amortize ~0.35us/step, keep VMEM safe,
# keep padding waste < 1 tile, give v7x's two TensorCores >=2 grid steps).
# ---------------------------------------------------------------------------
def _choose_tb(B, target):
    target = max(16, min(int(target), 4096))          # 4096 cap: v7x scoped-VMEM headroom
    B16 = _round_up(max(B, 1), 16)                    # bf16 sublane packing
    if B16 <= target and B16 < 2048:
        return B16                                    # single tile covers the whole batch
    # Multi-tile: TB a multiple of 128 so the lane-dense (1, TB) output block is
    # aligned; >=2 steps so both v7x TensorCores get work on the "parallel" axis;
    # TB ~ ceil(B/n_steps) keeps batch-padding waste under one tile.
    n_steps = max(2, pl.cdiv(B16, target))
    return max(128, _round_up(pl.cdiv(B16, n_steps), 128))


# ---------------------------------------------------------------------------
# Forward pass: batch-tiled pallas_call with resident, single-buffered weights.
# ---------------------------------------------------------------------------
def cnn_forward(x, ops, *, tb=2048):
    B, L = x.shape
    F1 = ops["t1"].shape[1]                           # CH*L1 = 612
    F2 = ops["t2"].shape[1]                           # CH*L2 = 306
    assert ops["t1"].shape[0] == L

    TB = _choose_tb(B, tb)
    n_tiles = pl.cdiv(B, TB)
    Bp = n_tiles * TB                                 # output padded to whole tiles only

    # Resident constants: constant index_map + single buffering (no re-DMA, no
    # pointless double buffer).
    def wspec(shape):
        return pl.BlockSpec(shape, lambda i: (0, 0), pipeline_mode=pl.Buffered(1))

    flops = 2 * Bp * (L * F1 + F1 * F2 + F2)
    bytes_accessed = (B * L * 4 + Bp * 4
                      + (L * F1 + F1 * F2) * 2 + (F1 + 2 * F2 + 1) * 4)

    out = pl.pallas_call(
        cnn_kernel,
        out_shape=jax.ShapeDtypeStruct((1, Bp), jnp.float32),
        grid=(n_tiles,),
        in_specs=[
            # x tile: pipelined (double-buffered) per grid step; the last tile may be
            # partial — Pallas clamps the DMA and the garbage rows are sliced off below.
            pl.BlockSpec((TB, L), lambda i: (i, 0)),
            wspec(ops["t1"].shape),                    # T1: resident in VMEM
            wspec(ops["t2"].shape),                    # T2: resident in VMEM
            wspec(ops["b1"].shape),                    # conv1 bias row (f32)
            wspec(ops["b2"].shape),                    # conv2 bias row (f32)
            wspec(ops["wl"].shape),                    # linear weight row
            wspec(ops["bl"].shape),                    # linear bias
        ],
        # Lane-dense output: each grid step writes a contiguous (1, TB) column slab.
        out_specs=pl.BlockSpec((1, TB), lambda i: (0, i)),
        compiler_params=pltpu.CompilerParams(
            dimension_semantics=("parallel",)),        # shards batch tiles across TCs on v7x
        cost_estimate=pl.CostEstimate(
            flops=flops, transcendentals=0, bytes_accessed=bytes_accessed),
    )(x.astype(jnp.float32), ops["t1"], ops["t2"], ops["b1"], ops["b2"],
      ops["wl"], ops["bl"])
    return out[0, :B].reshape(B, 1)


# ---------------------------------------------------------------------------
# Pure-JAX f32 reference (matches PyTorch semantics) for verification.
# ---------------------------------------------------------------------------
def reference_forward(x, params):
    B, L = x.shape
    x3 = x.reshape(B, 1, L)                               # torch.reshape(x, [B, 1, L])
    dn = ("NCH", "OIH", "NCH")
    h = jax.lax.conv_general_dilated(x3, params["w1"], (STRIDE,), [(PAD, PAD)],
                                     dimension_numbers=dn)
    h = jnp.maximum(h + params["b1"][None, :, None], 0.0)
    h = jax.lax.conv_general_dilated(h, params["w2"], (STRIDE,), [(PAD, PAD)],
                                     dimension_numbers=dn)
    h = jnp.maximum(h + params["b2"][None, :, None], 0.0)
    h = h.reshape(B, -1)                                  # [B, CH*L2] = [B, 306]
    return h @ params["wl"].T + params["bl"]


if __name__ == "__main__":
    B, L = 2, 36                                          # L=36 -> L1=18, L2=9, 34*9=306
    key = jax.random.PRNGKey(0)
    kx, k1, kb1, k2, kb2, kl, kbl = jax.random.split(key, 7)

    x = jax.random.normal(kx, (B, L), dtype=jnp.float32)
    params = {
        "w1": 0.2 * jax.random.normal(k1, (CH, CIN, K), dtype=jnp.float32),
        "b1": 0.1 * jax.random.normal(kb1, (CH,), dtype=jnp.float32),
        "w2": 0.05 * jax.random.normal(k2, (CH, CH, K), dtype=jnp.float32),
        "b2": 0.1 * jax.random.normal(kb2, (CH,), dtype=jnp.float32),
        "wl": 0.05 * jax.random.normal(kl, (1, 306), dtype=jnp.float32),
        "bl": 0.1 * jax.random.normal(kbl, (1,), dtype=jnp.float32),
    }

    ops = prepare_operators(params, L)                    # one-time weight lowering
    out = jax.block_until_ready(cnn_forward(x, ops))
    ref = jax.block_until_ready(reference_forward(x, params))

    assert out.shape == (B, 1), out.shape
    # bf16 matmul inputs with f32 accumulation and f32 biases -> relaxed tolerance.
    assert jnp.allclose(out, ref, rtol=2e-2, atol=2e-2), (out, ref)
    print("KERNEL_OK")
</pallas_src>

<mosaic_0001>
module attributes {stable_mosaic.version = 11 : i64} {
  func.func @cnn_kernel(%arg0: i32, %arg1: memref<16x36xf32, #tpu.memory_space<vmem>>, %arg2: memref<36x612xbf16, #tpu.memory_space<vmem>>, %arg3: memref<612x306xbf16, #tpu.memory_space<vmem>>, %arg4: memref<1x612xf32, #tpu.memory_space<vmem>>, %arg5: memref<1x306xf32, #tpu.memory_space<vmem>>, %arg6: memref<1x306xf32, #tpu.memory_space<vmem>>, %arg7: memref<1x1xf32, #tpu.memory_space<vmem>>, %arg8: memref<1x16xf32, #tpu.memory_space<vmem>>) attributes {dimension_semantics = [#tpu.dimension_semantics<parallel>], iteration_bounds = array<i64: 1>, scalar_prefetch = 0 : i64, scratch_operands = 0 : i64, tpu.core_type = #tpu.core_type<tc>, window_params = [{transform_indices = @transform_0, window_bounds = array<i64: 16, 36>}, {pipeline_mode = #tpu.pipeline_mode<synchronous>, transform_indices = @transform_1, window_bounds = array<i64: 36, 612>}, {pipeline_mode = #tpu.pipeline_mode<synchronous>, transform_indices = @transform_2, window_bounds = array<i64: 612, 306>}, {pipeline_mode = #tpu.pipeline_mode<synchronous>, transform_indices = @transform_3, window_bounds = array<i64: 1, 612>}, {pipeline_mode = #tpu.pipeline_mode<synchronous>, transform_indices = @transform_4, window_bounds = array<i64: 1, 306>}, {pipeline_mode = #tpu.pipeline_mode<synchronous>, transform_indices = @transform_5, window_bounds = array<i64: 1, 306>}, {pipeline_mode = #tpu.pipeline_mode<synchronous>, transform_indices = @transform_6, window_bounds = array<i64: 1, 1>}, {transform_indices = @transform_7, window_bounds = array<i64: 1, 16>}]} {
    %c0 = arith.constant 0 : index
    %c0_0 = arith.constant 0 : index
    %0 = vector.load %arg1[%c0, %c0_0] : memref<16x36xf32, #tpu.memory_space<vmem>>, vector<16x36xf32>
    %1 = arith.truncf %0 : vector<16x36xf32> to vector<16x36xbf16>
    %c0_1 = arith.constant 0 : index
    %c0_2 = arith.constant 0 : index
    %2 = vector.load %arg2[%c0_1, %c0_2] : memref<36x612xbf16, #tpu.memory_space<vmem>>, vector<36x612xbf16>
    %cst = arith.constant dense<0.000000e+00> : vector<16x612xf32>
    %3 = tpu.matmul %1, %2, %cst {dimension_numbers = #tpu.dot_dimension_numbers<[1], [0], [0], [1], [0, 0, 1, 1], [], []>} : vector<16x36xbf16>, vector<36x612xbf16>, vector<16x612xf32> -> vector<16x612xf32>
    %c0_3 = arith.constant 0 : index
    %c0_4 = arith.constant 0 : index
    %4 = vector.load %arg4[%c0_3, %c0_4] : memref<1x612xf32, #tpu.memory_space<vmem>>, vector<1x612xf32>
    %5 = vector.broadcast %4 : vector<1x612xf32> to vector<16x612xf32>
    %6 = arith.addf %3, %5 : vector<16x612xf32>
    %cst_5 = arith.constant 0.000000e+00 : f32
    %7 = vector.broadcast %cst_5 : f32 to vector<16x612xf32>
    %8 = arith.maximumf %6, %7 : vector<16x612xf32>
    %9 = arith.truncf %8 : vector<16x612xf32> to vector<16x612xbf16>
    %c0_6 = arith.constant 0 : index
    %c0_7 = arith.constant 0 : index
    %10 = vector.load %arg3[%c0_6, %c0_7] : memref<612x306xbf16, #tpu.memory_space<vmem>>, vector<612x306xbf16>
    %cst_8 = arith.constant dense<0.000000e+00> : vector<16x306xf32>
    %11 = tpu.matmul %9, %10, %cst_8 {dimension_numbers = #tpu.dot_dimension_numbers<[1], [0], [0], [1], [0, 0, 1, 1], [], []>} : vector<16x612xbf16>, vector<612x306xbf16>, vector<16x306xf32> -> vector<16x306xf32>
    %c0_9 = arith.constant 0 : index
    %c0_10 = arith.constant 0 : index
    %12 = vector.load %arg5[%c0_9, %c0_10] : memref<1x306xf32, #tpu.memory_space<vmem>>, vector<1x306xf32>
    %13 = vector.broadcast %12 : vector<1x306xf32> to vector<16x306xf32>
    %14 = arith.addf %11, %13 : vector<16x306xf32>
    %cst_11 = arith.constant 0.000000e+00 : f32
    %15 = vector.broadcast %cst_11 : f32 to vector<16x306xf32>
    %16 = arith.maximumf %14, %15 : vector<16x306xf32>
    %c0_12 = arith.constant 0 : index
    %c0_13 = arith.constant 0 : index
    %17 = vector.load %arg6[%c0_12, %c0_13] : memref<1x306xf32, #tpu.memory_space<vmem>>, vector<1x306xf32>
    %18 = vector.broadcast %17 : vector<1x306xf32> to vector<16x306xf32>
    %19 = arith.mulf %16, %18 : vector<16x306xf32>
    %cst_14 = arith.constant dense<0.000000e+00> : vector<16xf32>
    %20 = vector.multi_reduction <add>, %19, %cst_14 [1] : vector<16x306xf32> to vector<16xf32>
    %21 = vector.shape_cast %20 : vector<16xf32> to vector<1x16xf32>
    %c0_15 = arith.constant 0 : index
    %c0_16 = arith.constant 0 : index
    %22 = vector.load %arg7[%c0_15, %c0_16] : memref<1x1xf32, #tpu.memory_space<vmem>>, vector<1x1xf32>
    %23 = vector.broadcast %22 : vector<1x1xf32> to vector<1x16xf32>
    %24 = arith.addf %21, %23 : vector<1x16xf32>
    %c0_17 = arith.constant 0 : index
    %c0_18 = arith.constant 0 : index
    %25 = vector.load %arg8[%c0_17, %c0_18] : memref<1x16xf32, #tpu.memory_space<vmem>>, vector<1x16xf32>
    tpu.vector_store %arg8[%c0_17, %c0_18], %24 {strides = array<i32>} : memref<1x16xf32, #tpu.memory_space<vmem>>, vector<1x16xf32>,
    return
  }
  func.func @transform_0(%arg0: i32) -> (i32, i32) {
    %c0_i32 = arith.constant 0 : i32
    %c0_i32_0 = arith.constant 0 : i32
    return %arg0, %c0_i32 : i32, i32
  }
  func.func @transform_1(%arg0: i32) -> (i32, i32) {
    %c0_i32 = arith.constant 0 : i32
    %c0_i32_0 = arith.constant 0 : i32
    %c0_i32_1 = arith.constant 0 : i32
    return %c0_i32, %c0_i32_0 : i32, i32
  }
  func.func @transform_2(%arg0: i32) -> (i32, i32) {
    %c0_i32 = arith.constant 0 : i32
    %c0_i32_0 = arith.constant 0 : i32
    %c0_i32_1 = arith.constant 0 : i32
    return %c0_i32, %c0_i32_0 : i32, i32
  }
  func.func @transform_3(%arg0: i32) -> (i32, i32) {
    %c0_i32 = arith.constant 0 : i32
    %c0_i32_0 = arith.constant 0 : i32
    %c0_i32_1 = arith.constant 0 : i32
    return %c0_i32, %c0_i32_0 : i32, i32
  }
  func.func @transform_4(%arg0: i32) -> (i32, i32) {
    %c0_i32 = arith.constant 0 : i32
    %c0_i32_0 = arith.constant 0 : i32
    %c0_i32_1 = arith.constant 0 : i32
    return %c0_i32, %c0_i32_0 : i32, i32
  }
  func.func @transform_5(%arg0: i32) -> (i32, i32) {
    %c0_i32 = arith.constant 0 : i32
    %c0_i32_0 = arith.constant 0 : i32
    %c0_i32_1 = arith.constant 0 : i32
    return %c0_i32, %c0_i32_0 : i32, i32
  }
  func.func @transform_6(%arg0: i32) -> (i32, i32) {
    %c0_i32 = arith.constant 0 : i32
    %c0_i32_0 = arith.constant 0 : i32
    %c0_i32_1 = arith.constant 0 : i32
    return %c0_i32, %c0_i32_0 : i32, i32
  }
  func.func @transform_7(%arg0: i32) -> (i32, i32) {
    %c0_i32 = arith.constant 0 : i32
    %c0_i32_0 = arith.constant 0 : i32
    return %c0_i32, %arg0 : i32, i32
  }
}

</mosaic_0001>

<llo_original>
// kernel: tpu_custom_call.1
$region0: #{tpu_custom_call.1}
  #allocation0 [shape = 'u32[]', space=smem, size = 0x4, offset = 0x4, fixed_abs, tag = 'smem constant byte address 0x4 - core index']
  #allocation1 [shape = 'u32[72,128]{1,0:T(1,128)}', space=vmem, size = 0x9000, scoped, tag = 'internal scratch']
  #allocation2 [shape = 'f32[1,1]{1,0:T(1,128)S(1)}', space=vmem, size = 0x200, scoped, tag = 'scoped memory for tpu_custom_call.1']
  %s0 = inlined_call_operand.vmem [shape: f32[2,36], index: 0, kind: input, shape index: {}]
  %s1 = inlined_call_operand.vmem [shape: bf16[36,612], index: 1, kind: input, shape index: {}]
  %s2 = inlined_call_operand.vmem [shape: bf16[612,306], index: 2, kind: input, shape index: {}]
  %s3 = inlined_call_operand.vmem [shape: f32[1,612], index: 3, kind: input, shape index: {}]
  %s4 = inlined_call_operand.vmem [shape: f32[1,306], index: 4, kind: input, shape index: {}]
  %s5 = inlined_call_operand.vmem [shape: f32[1,306], index: 5, kind: input, shape index: {}]
  %s6 = inlined_call_operand.<no memory space> [shape: f32[1,1], index: 6, kind: input, shape index: {}]
  %s7 = inlined_call_operand.hbm [shape: f32[1,16], index: 7, kind: output, shape index: {}]
  %s8 = sld [smem:[#allocation0]]
  $region38: #{tpu_custom_call.1} parent=0
    _
  %s10 = ssub.s32 1, %s8
  %s11 = scalar_select 0, %s10, %s8
  %v12 = vstv %s6
  %13 = vst [vmem:[#allocation2] sm:$0x1] %v12
  $region1: #{tpu_custom_call.1} parent=0
    #allocation3 [shape = 'u8[512]{0}', space=vmem, size = 0x400, scoped, tag = 'output window, operand 0, single buffered']
    #allocation4 [shape = 's32[1]{0}', space=sflag, size = 0x4, scoped, tag = 'scoped memory for tpu_custom_call.1']
    %14 = vsyncpa [#allocation4], 0
    // Predicated region
    $region2: #{tpu_custom_call.1} parent=1 // pred_check
      _
    $region3: #{tpu_custom_call.1} parent=1 // pred_check_branch
      %16 = sbr.rel (0) target = $region5
    $region4: #{tpu_custom_call.1} parent=1 // pred_region
      _
    $region5: #{tpu_custom_call.1} parent=1 // pred_fallthru
      _
    // Predicated region
    $region6: #{tpu_custom_call.1} parent=1 // pred_check
      _
    $region7: #{tpu_custom_call.1} parent=1 // pred_check_branch
      %18 = sbr.rel (0) target = $region9
    $region8: #{tpu_custom_call.1} parent=1 // pred_region
      _
    $region9: #{tpu_custom_call.1} parent=1 // pred_fallthru
      _
    // Predicated region
    $region10: #{tpu_custom_call.1} parent=1 // pred_check
      _
    $region11: #{tpu_custom_call.1} parent=1 // pred_check_branch
      %20 = sbr.rel (0) target = $region13
    $region12: #{tpu_custom_call.1} parent=1 // pred_region
      _
    $region13: #{tpu_custom_call.1} parent=1 // pred_fallthru
      _
    // Predicated region
    $region14: #{tpu_custom_call.1} parent=1 // pred_check
      _
    $region15: #{tpu_custom_call.1} parent=1 // pred_check_branch
      %22 = sbr.rel (0) target = $region17
    $region16: #{tpu_custom_call.1} parent=1 // pred_region
      _
    $region17: #{tpu_custom_call.1} parent=1 // pred_fallthru
      _
    // Predicated region
    $region18: #{tpu_custom_call.1} parent=1 // pred_check
      _
    $region19: #{tpu_custom_call.1} parent=1 // pred_check_branch
      %24 = sbr.rel (0) target = $region21
    $region20: #{tpu_custom_call.1} parent=1 // pred_region
      _
    $region21: #{tpu_custom_call.1} parent=1 // pred_fallthru
      _
    // Predicated region
    $region22: #{tpu_custom_call.1} parent=1 // pred_check
      _
    $region23: #{tpu_custom_call.1} parent=1 // pred_check_branch
      %26 = sbr.rel (0) target = $region25
    $region24: #{tpu_custom_call.1} parent=1 // pred_region
      _
    $region25: #{tpu_custom_call.1} parent=1 // pred_fallthru
      _
    // Predicated region
    $region26: #{tpu_custom_call.1} parent=1 // pred_check
      _
    $region27: #{tpu_custom_call.1} parent=1 // pred_check_branch
      %28 = sbr.rel (0) target = $region29
    $region28: #{tpu_custom_call.1} parent=1 // pred_region
      _
    $region29: #{tpu_custom_call.1} parent=1 // pred_fallthru
      _
    %v30 = vld [vmem:[%s0] sm:$0xff]
    %v31 = vld [vmem:[%s0 + $0x8] sm:$0xff]
    %v32 = vpack.c.bf16 %v31, %v30
    %v33 = vld [vmem:[%s1] sm:$0xff]
    %v34 = vld [vmem:[%s1 + $0x8] sm:$0xff]
    %v35 = vld [vmem:[%s1 + $0x10] sm:$0xf]
    %v36 = vld [vmem:[%s1 + $0x14] sm:$0xff]
    %v37 = vld [vmem:[%s1 + $0x1c] sm:$0xff]
    %v38 = vld [vmem:[%s1 + $0x24] sm:$0xf]
    %v39 = vld [vmem:[%s1 + $0x28] sm:$0xff]
    %v40 = vld [vmem:[%s1 + $0x30] sm:$0xff]
    %v41 = vld [vmem:[%s1 + $0x38] sm:$0xf]
    %v42 = vld [vmem:[%s1 + $0x3c] sm:$0xff]
    %v43 = vld [vmem:[%s1 + $0x44] sm:$0xff]
    %v44 = vld [vmem:[%s1 + $0x4c] sm:$0xf]
    %v45 = vld [vmem:[%s1 + $0x50] sm:$0x33]
    %v46 = vld [vmem:[%s1 + $0x58] sm:$0x33]
    %v47 = vld [vmem:[%s1 + $0x60] sm:$0x3]
    %v48 = vld [vmem:[%s3] sm:$0x1f]
    %v50 = vperm.slane %v48, 0
    %v51 = vperm.slane %v48, 1
    %v52 = vperm.slane %v48, 2
    %v53 = vperm.slane %v48, 3
    %v54 = vperm.slane %v48, 4
    %v75 = vunpack.c.l.b16 %v33
    %v76 = vunpack.c.h.b16 %v33
    %v77 = vunpack.c.l.b16 %v34
    %v78 = vunpack.c.h.b16 %v34
    %v79 = vunpack.c.l.b16 %v35
    %v80 = vunpack.c.l.b16 %v36
    %v81 = vunpack.c.h.b16 %v36
    %v82 = vunpack.c.l.b16 %v37
    %v83 = vunpack.c.h.b16 %v37
    %v84 = vunpack.c.l.b16 %v38
    %v85 = vunpack.c.l.b16 %v39
    %v86 = vunpack.c.h.b16 %v39
    %v87 = vunpack.c.l.b16 %v40
    %v88 = vunpack.c.h.b16 %v40
    %v89 = vunpack.c.l.b16 %v41
    %v90 = vunpack.c.l.b16 %v42
    %v91 = vunpack.c.h.b16 %v42
    %v92 = vunpack.c.l.b16 %v43
    %v93 = vunpack.c.h.b16 %v43
    %v94 = vunpack.c.l.b16 %v44
    %v95 = vunpack.c.l.b16 %v45
    %v96 = vunpack.c.h.b16 %v45
    %v97 = vunpack.c.l.b16 %v46
    %v98 = vunpack.c.h.b16 %v46
    %v99 = vunpack.c.l.b16 %v47
    %v100 = vpack.c.b16 %v80, %v75
    %v101 = vpack.c.b16 %v81, %v76
    %v102 = vpack.c.b16 %v82, %v77
    %v103 = vpack.c.b16 %v83, %v78
    %v104 = vpack.c.b16 %v84, %v79
    %v105 = vpack.c.b16 %v90, %v85
    %v106 = vpack.c.b16 %v91, %v86
    %v107 = vpack.c.b16 %v92, %v87
    %v108 = vpack.c.b16 %v93, %v88
    %v109 = vpack.c.b16 %v94, %v89
    %v110 = vpack.c.b16 %v95, %v95
    %v111 = vpack.c.b16 %v96, %v96
    %v112 = vpack.c.b16 %v97, %v97
    %v113 = vpack.c.b16 %v98, %v98
    %v114 = vpack.c.b16 %v99, %v99
    %vm125 = vcmask 293888
    %v127 = vsel %vm125, %v32, 0
    %vm129 = vcmask 1041408
    %v131 = vsel %vm129, %v110, 0
    %v134 = vsel %vm129, %v111, 0
    %v137 = vsel %vm129, %v112, 0
    %v140 = vsel %vm129, %v113, 0
    %v143 = vsel %vm129, %v114, 0
    %145 = vmatpush.bf16.msra.mxu0 0
    %146 = vmatpush.bf16.msra.mxu0 0
    %147 = vmatpush.bf16.msra.mxu0 0
    %148 = vmatpush.bf16.msra.mxu0 0
    %149 = vmatpush.bf16.msra.mxu0 0
    %150 = vmatpush.bf16.msra.mxu0 %v131
    %151 = vmatpush.bf16.msra.mxu0 %v105
    %152 = vmatpush.bf16.msra.mxu0 %v100
    %153 = vmatmul.bf16.gmra.mxu0 %v127
    %v154 = vpop.f32.mrf.mxu0
    %v155 = vadd.f32 %v50, %v154
    %v156 = vpop.f32.mrf.mxu0
    %v157 = vadd.f32 %v50, %v156
    %158 = vdwg.mxu0
    %159 = vmatpush.bf16.msra.mxu0 0
    %160 = vmatpush.bf16.msra.mxu0 0
    %161 = vmatpush.bf16.msra.mxu0 0
    %162 = vmatpush.bf16.msra.mxu0 0
    %163 = vmatpush.bf16.msra.mxu0 0
    %164 = vmatpush.bf16.msra.mxu0 %v134
    %165 = vmatpush.bf16.msra.mxu0 %v106
    %166 = vmatpush.bf16.msra.mxu0 %v101
    %167 = vmatmul.bf16.gmra.mxu0 %v127
    %v168 = vpop.f32.mrf.mxu0
    %v169 = vadd.f32 %v51, %v168
    %v170 = vpop.f32.mrf.mxu0
    %v171 = vadd.f32 %v51, %v170
    %172 = vdwg.mxu0
    %173 = vmatpush.bf16.msra.mxu0 0
    %174 = vmatpush.bf16.msra.mxu0 0
    %175 = vmatpush.bf16.msra.mxu0 0
    %176 = vmatpush.bf16.msra.mxu0 0
    %177 = vmatpush.bf16.msra.mxu0 0
    %178 = vmatpush.bf16.msra.mxu0 %v137
    %179 = vmatpush.bf16.msra.mxu0 %v107
    %180 = vmatpush.bf16.msra.mxu0 %v102
    %181 = vmatmul.bf16.gmra.mxu0 %v127
    %v182 = vpop.f32.mrf.mxu0
    %v183 = vadd.f32 %v52, %v182
    %v184 = vpop.f32.mrf.mxu0
    %v185 = vadd.f32 %v52, %v184
    %186 = vdwg.mxu0
    %187 = vmatpush.bf16.msra.mxu0 0
    %188 = vmatpush.bf16.msra.mxu0 0
    %189 = vmatpush.bf16.msra.mxu0 0
    %190 = vmatpush.bf16.msra.mxu0 0
    %191 = vmatpush.bf16.msra.mxu0 0
    %192 = vmatpush.bf16.msra.mxu0 %v140
    %193 = vmatpush.bf16.msra.mxu0 %v108
    %194 = vmatpush.bf16.msra.mxu0 %v103
    %195 = vmatmul.bf16.gmra.mxu0 %v127
    %v196 = vpop.f32.mrf.mxu0
    %v197 = vadd.f32 %v53, %v196
    %v198 = vpop.f32.mrf.mxu0
    %v199 = vadd.f32 %v53, %v198
    %200 = vdwg.mxu0
    %201 = vmatpush.bf16.msra.mxu0 0
    %202 = vmatpush.bf16.msra.mxu0 0
    %203 = vmatpush.bf16.msra.mxu0 0
    %204 = vmatpush.bf16.msra.mxu0 0
    %205 = vmatpush.bf16.msra.mxu0 0
    %206 = vmatpush.bf16.msra.mxu0 %v143
    %207 = vmatpush.bf16.msra.mxu0 %v109
    %208 = vmatpush.bf16.msra.mxu0 %v104
    %209 = vmatmul.bf16.gmra.mxu0 %v127
    %v210 = vpop.f32.mrf.mxu0
    %v211 = vadd.f32 %v54, %v210
    %v212 = vpop.f32.mrf.mxu0
    %v213 = vadd.f32 %v54, %v212
    %214 = vdwg.mxu0
    %v215 = vmax.f32 %v155, 0.0
    %v216 = vmax.f32 %v169, 0.0
    %v217 = vmax.f32 %v183, 0.0
    %v218 = vmax.f32 %v197, 0.0
    %v219 = vmax.f32 %v211, 0.0
    %v220 = vmax.f32 %v157, 0.0
    %v221 = vmax.f32 %v171, 0.0
    %v222 = vmax.f32 %v185, 0.0
    %v223 = vmax.f32 %v199, 0.0
    %v224 = vmax.f32 %v213, 0.0
    %v225 = vpack.c.bf16 %v220, %v215
    %v226 = vpack.c.bf16 %v221, %v216
    %v227 = vpack.c.bf16 %v222, %v217
    %v228 = vpack.c.bf16 %v223, %v218
    %v229 = vpack.c.bf16 %v224, %v219
    %v230 = vld [vmem:[%s2] sm:$0xff]
    %v231 = vld [vmem:[%s2 + $0x8] sm:$0xf]
    %v232 = vld [vmem:[%s2 + $0xc] sm:$0xff]
    %v233 = vld [vmem:[%s2 + $0x14] sm:$0xf]
    %v234 = vld [vmem:[%s2 + $0x18] sm:$0xff]
    %v235 = vld [vmem:[%s2 + $0x20] sm:$0xf]
    %v236 = vld [vmem:[%s2 + $0x24] sm:$0xff]
    %v237 = vld [vmem:[%s2 + $0x2c] sm:$0xf]
    %v238 = vld [vmem:[%s2 + $0x30] sm:$0xff]
    %v239 = vld [vmem:[%s2 + $0x38] sm:$0xf]
    %v240 = vld [vmem:[%s2 + $0x3c] sm:$0xff]
    %v241 = vld [vmem:[%s2 + $0x44] sm:$0xf]
    %v242 = vld [vmem:[%s2 + $0x48] sm:$0xff]
    %v243 = vld [vmem:[%s2 + $0x50] sm:$0xf]
    %v244 = vld [vmem:[%s2 + $0x54] sm:$0xff]
    %v245 = vld [vmem:[%s2 + $0x5c] sm:$0xf]
    %v246 = vld [vmem:[%s2 + $0x60] sm:$0xff]
    %v247 = vld [vmem:[%s2 + $0x68] sm:$0xf]
    %v248 = vld [vmem:[%s2 + $0x6c] sm:$0xff]
    %v249 = vld [vmem:[%s2 + $0x74] sm:$0xf]
    %v250 = vld [vmem:[%s2 + $0x78] sm:$0xff]
    %v251 = vld [vmem:[%s2 + $0x80] sm:$0xf]
    %v252 = vld [vmem:[%s2 + $0x84] sm:$0xff]
    %v253 = vld [vmem:[%s2 + $0x8c] sm:$0xf]
    %v254 = vld [vmem:[%s2 + $0x90] sm:$0xff]
    %v255 = vld [vmem:[%s2 + $0x98] sm:$0xf]
    %v256 = vld [vmem:[%s2 + $0x9c] sm:$0xff]
    %v257 = vld [vmem:[%s2 + $0xa4] sm:$0xf]
    %v258 = vld [vmem:[%s2 + $0xa8] sm:$0xff]
    %v259 = vld [vmem:[%s2 + $0xb0] sm:$0xf]
    %v260 = vld [vmem:[%s2 + $0xb4] sm:$0xff]
    %v261 = vld [vmem:[%s2 + $0xbc] sm:$0xf]
    %v262 = vld [vmem:[%s2 + $0xc0] sm:$0xff]
    %v263 = vld [vmem:[%s2 + $0xc8] sm:$0xf]
    %v264 = vld [vmem:[%s2 + $0xcc] sm:$0xff]
    %v265 = vld [vmem:[%s2 + $0xd4] sm:$0xf]
    %v266 = vld [vmem:[%s2 + $0xd8] sm:$0xff]
    %v267 = vld [vmem:[%s2 + $0xe0] sm:$0xf]
    %v268 = vld [vmem:[%s2 + $0xe4] sm:$0xff]
    %v269 = vld [vmem:[%s2 + $0xec] sm:$0xf]
    %v270 = vld [vmem:[%s2 + $0xf0] sm:$0xff]
    %v271 = vld [vmem:[%s2 + $0xf8] sm:$0xf]
    %v272 = vld [vmem:[%s2 + $0xfc] sm:$0xff]
    %v273 = vld [vmem:[%s2 + $0x104] sm:$0xf]
    %v274 = vld [vmem:[%s2 + $0x108] sm:$0xff]
    %v275 = vld [vmem:[%s2 + $0x110] sm:$0xf]
    %v276 = vld [vmem:[%s2 + $0x114] sm:$0xff]
    %v277 = vld [vmem:[%s2 + $0x11c] sm:$0xf]
    %v278 = vld [vmem:[%s2 + $0x120] sm:$0xff]
    %v279 = vld [vmem:[%s2 + $0x128] sm:$0xf]
    %v280 = vld [vmem:[%s2 + $0x12c] sm:$0xff]
    %v281 = vld [vmem:[%s2 + $0x134] sm:$0xf]
    %v282 = vld [vmem:[%s2 + $0x138] sm:$0xff]
    %v283 = vld [vmem:[%s2 + $0x140] sm:$0xf]
    %v284 = vld [vmem:[%s2 + $0x144] sm:$0xff]
    %v285 = vld [vmem:[%s2 + $0x14c] sm:$0xf]
    %v286 = vld [vmem:[%s2 + $0x150] sm:$0xff]
    %v287 = vld [vmem:[%s2 + $0x158] sm:$0xf]
    %v288 = vld [vmem:[%s2 + $0x15c] sm:$0xff]
    %v289 = vld [vmem:[%s2 + $0x164] sm:$0xf]
    %v290 = vld [vmem:[%s2 + $0x168] sm:$0xff]
    %v291 = vld [vmem:[%s2 + $0x170] sm:$0xf]
    %v292 = vld [vmem:[%s2 + $0x174] sm:$0xff]
    %v293 = vld [vmem:[%s2 + $0x17c] sm:$0xf]
    %v294 = vld [vmem:[%s2 + $0x180] sm:$0xff]
    %v295 = vld [vmem:[%s2 + $0x188] sm:$0xf]
    %v296 = vld [vmem:[%s2 + $0x18c] sm:$0xff]
    %v297 = vld [vmem:[%s2 + $0x194] sm:$0xf]
    %v298 = vld [vmem:[%s2 + $0x198] sm:$0xff]
    %v299 = vld [vmem:[%s2 + $0x1a0] sm:$0xf]
    %v300 = vld [vmem:[%s2 + $0x1a4] sm:$0xff]
    %v301 = vld [vmem:[%s2 + $0x1ac] sm:$0xf]
    %v302 = vld [vmem:[%s2 + $0x1b0] sm:$0xff]
    %v303 = vld [vmem:[%s2 + $0x1b8] sm:$0xf]
    %v304 = vld [vmem:[%s2 + $0x1bc] sm:$0xff]
    %v305 = vld [vmem:[%s2 + $0x1c4] sm:$0xf]
    %v306 = vld [vmem:[%s2 + $0x1c8] sm:$0xff]
    %v307 = vld [vmem:[%s2 + $0x1d0] sm:$0xf]
    %v308 = vld [vmem:[%s2 + $0x1d4] sm:$0xff]
    %v309 = vld [vmem:[%s2 + $0x1dc] sm:$0xf]
    %v310 = vld [vmem:[%s2 + $0x1e0] sm:$0xff]
    %v311 = vld [vmem:[%s2 + $0x1e8] sm:$0xf]
    %v312 = vld [vmem:[%s2 + $0x1ec] sm:$0xff]
    %v313 = vld [vmem:[%s2 + $0x1f4] sm:$0xf]
    %v314 = vld [vmem:[%s2 + $0x1f8] sm:$0xff]
    %v315 = vld [vmem:[%s2 + $0x200] sm:$0xf]
    %v316 = vld [vmem:[%s2 + $0x204] sm:$0xff]
    %v317 = vld [vmem:[%s2 + $0x20c] sm:$0xf]
    %v318 = vld [vmem:[%s2 + $0x210] sm:$0xff]
    %v319 = vld [vmem:[%s2 + $0x218] sm:$0xf]
    %v320 = vld [vmem:[%s2 + $0x21c] sm:$0xff]
    %v321 = vld [vmem:[%s2 + $0x224] sm:$0xf]
    %v322 = vld [vmem:[%s2 + $0x228] sm:$0xff]
    %v323 = vld [vmem:[%s2 + $0x230] sm:$0xf]
    %v324 = vld [vmem:[%s2 + $0x234] sm:$0xff]
    %v325 = vld [vmem:[%s2 + $0x23c] sm:$0xf]
    %v326 = vld [vmem:[%s2 + $0x240] sm:$0xff]
    %v327 = vld [vmem:[%s2 + $0x248] sm:$0xf]
    %v328 = vld [vmem:[%s2 + $0x24c] sm:$0xff]
    %v329 = vld [vmem:[%s2 + $0x254] sm:$0xf]
    %v330 = vld [vmem:[%s2 + $0x258] sm:$0xff]
    %v331 = vld [vmem:[%s2 + $0x260] sm:$0xf]
    %v332 = vld [vmem:[%s2 + $0x264] sm:$0xff]
    %v333 = vld [vmem:[%s2 + $0x26c] sm:$0xf]
    %v334 = vld [vmem:[%s2 + $0x270] sm:$0xff]
    %v335 = vld [vmem:[%s2 + $0x278] sm:$0xf]
    %v336 = vld [vmem:[%s2 + $0x27c] sm:$0xff]
    %v337 = vld [vmem:[%s2 + $0x284] sm:$0xf]
    %v338 = vld [vmem:[%s2 + $0x288] sm:$0xff]
    %v339 = vld [vmem:[%s2 + $0x290] sm:$0xf]
    %v340 = vld [vmem:[%s2 + $0x294] sm:$0xff]
    %v341 = vld [vmem:[%s2 + $0x29c] sm:$0xf]
    %v342 = vld [vmem:[%s2 + $0x2a0] sm:$0xff]
    %v343 = vld [vmem:[%s2 + $0x2a8] sm:$0xf]
    %v344 = vld [vmem:[%s2 + $0x2ac] sm:$0xff]
    %v345 = vld [vmem:[%s2 + $0x2b4] sm:$0xf]
    %v346 = vld [vmem:[%s2 + $0x2b8] sm:$0xff]
    %v347 = vld [vmem:[%s2 + $0x2c0] sm:$0xf]
    %v348 = vld [vmem:[%s2 + $0x2c4] sm:$0xff]
    %v349 = vld [vmem:[%s2 + $0x2cc] sm:$0xf]
    %v350 = vld [vmem:[%s2 + $0x2d0] sm:$0xff]
    %v351 = vld [vmem:[%s2 + $0x2d8] sm:$0xf]
    %v352 = vld [vmem:[%s2 + $0x2dc] sm:$0xff]
    %v353 = vld [vmem:[%s2 + $0x2e4] sm:$0xf]
    %v354 = vld [vmem:[%s2 + $0x2e8] sm:$0xff]
    %v355 = vld [vmem:[%s2 + $0x2f0] sm:$0xf]
    %v356 = vld [vmem:[%s2 + $0x2f4] sm:$0xff]
    %v357 = vld [vmem:[%s2 + $0x2fc] sm:$0xf]
    %v358 = vld [vmem:[%s2 + $0x300] sm:$0xff]
    %v359 = vld [vmem:[%s2 + $0x308] sm:$0xf]
    %v360 = vld [vmem:[%s2 + $0x30c] sm:$0xff]
    %v361 = vld [vmem:[%s2 + $0x314] sm:$0xf]
    %v362 = vld [vmem:[%s2 + $0x318] sm:$0xff]
    %v363 = vld [vmem:[%s2 + $0x320] sm:$0xf]
    %v364 = vld [vmem:[%s2 + $0x324] sm:$0xff]
    %v365 = vld [vmem:[%s2 + $0x32c] sm:$0xf]
    %v366 = vld [vmem:[%s2 + $0x330] sm:$0xff]
    %v367 = vld [vmem:[%s2 + $0x338] sm:$0xf]
    %v368 = vld [vmem:[%s2 + $0x33c] sm:$0xff]
    %v369 = vld [vmem:[%s2 + $0x344] sm:$0xf]
    %v370 = vld [vmem:[%s2 + $0x348] sm:$0xff]
    %v371 = vld [vmem:[%s2 + $0x350] sm:$0xf]
    %v372 = vld [vmem:[%s2 + $0x354] sm:$0xff]
    %v373 = vld [vmem:[%s2 + $0x35c] sm:$0xf]
    %v374 = vld [vmem:[%s2 + $0x360] sm:$0xff]
    %v375 = vld [vmem:[%s2 + $0x368] sm:$0xf]
    %v376 = vld [vmem:[%s2 + $0x36c] sm:$0xff]
    %v377 = vld [vmem:[%s2 + $0x374] sm:$0xf]
    %v378 = vld [vmem:[%s2 + $0x378] sm:$0xff]
    %v379 = vld [vmem:[%s2 + $0x380] sm:$0xf]
    %v380 = vld [vmem:[%s2 + $0x384] sm:$0xff]
    %v381 = vld [vmem:[%s2 + $0x38c] sm:$0xf]
    %v382 = vld [vmem:[%s2 + $0x390] sm:$0x33]
    %v383 = vld [vmem:[%s2 + $0x398] sm:$0x3]
    %v384 = vld [vmem:[%s4] sm:$0x7]
    %v386 = vperm.slane %v384, 0
    %v387 = vperm.slane %v384, 1
    %v388 = vperm.slane %v384, 2
    %v546 = vunpack.c.l.b16 %v230
    %v547 = vunpack.c.h.b16 %v230
    %v548 = vunpack.c.l.b16 %v231
    %v549 = vunpack.c.l.b16 %v232
    %v550 = vunpack.c.h.b16 %v232
    %v551 = vunpack.c.l.b16 %v233
    %v552 = vunpack.c.l.b16 %v234
    %v553 = vunpack.c.h.b16 %v234
    %v554 = vunpack.c.l.b16 %v235
    %v555 = vunpack.c.l.b16 %v236
    %v556 = vunpack.c.h.b16 %v236
    %v557 = vunpack.c.l.b16 %v237
    %v558 = vunpack.c.l.b16 %v238
    %v559 = vunpack.c.h.b16 %v238
    %v560 = vunpack.c.l.b16 %v239
    %v561 = vunpack.c.l.b16 %v240
    %v562 = vunpack.c.h.b16 %v240
    %v563 = vunpack.c.l.b16 %v241
    %v564 = vunpack.c.l.b16 %v242
    %v565 = vunpack.c.h.b16 %v242
    %v566 = vunpack.c.l.b16 %v243
    %v567 = vunpack.c.l.b16 %v244
    %v568 = vunpack.c.h.b16 %v244
    %v569 = vunpack.c.l.b16 %v245
    %v570 = vunpack.c.l.b16 %v246
    %v571 = vunpack.c.h.b16 %v246
    %v572 = vunpack.c.l.b16 %v247
    %v573 = vunpack.c.l.b16 %v248
    %v574 = vunpack.c.h.b16 %v248
    %v575 = vunpack.c.l.b16 %v249
    %v576 = vunpack.c.l.b16 %v250
    %v577 = vunpack.c.h.b16 %v250
    %v578 = vunpack.c.l.b16 %v251
    %v579 = vunpack.c.l.b16 %v252
    %v580 = vunpack.c.h.b16 %v252
    %v581 = vunpack.c.l.b16 %v253
    %v582 = vunpack.c.l.b16 %v254
    %v583 = vunpack.c.h.b16 %v254
    %v584 = vunpack.c.l.b16 %v255
    %v585 = vunpack.c.l.b16 %v256
    %v586 = vunpack.c.h.b16 %v256
    %v587 = vunpack.c.l.b16 %v257
    %v588 = vunpack.c.l.b16 %v258
    %v589 = vunpack.c.h.b16 %v258
    %v590 = vunpack.c.l.b16 %v259
    %v591 = vunpack.c.l.b16 %v260
    %v592 = vunpack.c.h.b16 %v260
    %v593 = vunpack.c.l.b16 %v261
    %v594 = vunpack.c.l.b16 %v262
    %v595 = vunpack.c.h.b16 %v262
    %v596 = vunpack.c.l.b16 %v263
    %v597 = vunpack.c.l.b16 %v264
    %v598 = vunpack.c.h.b16 %v264
    %v599 = vunpack.c.l.b16 %v265
    %v600 = vunpack.c.l.b16 %v266
    %v601 = vunpack.c.h.b16 %v266
    %v602 = vunpack.c.l.b16 %v267
    %v603 = vunpack.c.l.b16 %v268
    %v604 = vunpack.c.h.b16 %v268
    %v605 = vunpack.c.l.b16 %v269
    %v606 = vunpack.c.l.b16 %v270
    %v607 = vunpack.c.h.b16 %v270
    %v608 = vunpack.c.l.b16 %v271
    %v609 = vunpack.c.l.b16 %v272
    %v610 = vunpack.c.h.b16 %v272
    %v611 = vunpack.c.l.b16 %v273
    %v612 = vunpack.c.l.b16 %v274
    %v613 = vunpack.c.h.b16 %v274
    %v614 = vunpack.c.l.b16 %v275
    %v615 = vunpack.c.l.b16 %v276
    %v616 = vunpack.c.h.b16 %v276
    %v617 = vunpack.c.l.b16 %v277
    %v618 = vunpack.c.l.b16 %v278
    %v619 = vunpack.c.h.b16 %v278
    %v620 = vunpack.c.l.b16 %v279
    %v621 = vunpack.c.l.b16 %v280
    %v622 = vunpack.c.h.b16 %v280
    %v623 = vunpack.c.l.b16 %v281
    %v624 = vunpack.c.l.b16 %v282
    %v625 = vunpack.c.h.b16 %v282
    %v626 = vunpack.c.l.b16 %v283
    %v627 = vunpack.c.l.b16 %v284
    %v628 = vunpack.c.h.b16 %v284
    %v629 = vunpack.c.l.b16 %v285
    %v630 = vunpack.c.l.b16 %v286
    %v631 = vunpack.c.h.b16 %v286
    %v632 = vunpack.c.l.b16 %v287
    %v633 = vunpack.c.l.b16 %v288
    %v634 = vunpack.c.h.b16 %v288
    %v635 = vunpack.c.l.b16 %v289
    %v636 = vunpack.c.l.b16 %v290
    %v637 = vunpack.c.h.b16 %v290
    %v638 = vunpack.c.l.b16 %v291
    %v639 = vunpack.c.l.b16 %v292
    %v640 = vunpack.c.h.b16 %v292
    %v641 = vunpack.c.l.b16 %v293
    %v642 = vunpack.c.l.b16 %v294
    %v643 = vunpack.c.h.b16 %v294
    %v644 = vunpack.c.l.b16 %v295
    %v645 = vunpack.c.l.b16 %v296
    %v646 = vunpack.c.h.b16 %v296
    %v647 = vunpack.c.l.b16 %v297
    %v648 = vunpack.c.l.b16 %v298
    %v649 = vunpack.c.h.b16 %v298
    %v650 = vunpack.c.l.b16 %v299
    %v651 = vunpack.c.l.b16 %v300
    %v652 = vunpack.c.h.b16 %v300
    %v653 = vunpack.c.l.b16 %v301
    %v654 = vunpack.c.l.b16 %v302
    %v655 = vunpack.c.h.b16 %v302
    %v656 = vunpack.c.l.b16 %v303
    %v657 = vunpack.c.l.b16 %v304
    %v658 = vunpack.c.h.b16 %v304
    %v659 = vunpack.c.l.b16 %v305
    %v660 = vunpack.c.l.b16 %v306
    %v661 = vunpack.c.h.b16 %v306
    %v662 = vunpack.c.l.b16 %v307
    %v663 = vunpack.c.l.b16 %v308
    %v664 = vunpack.c.h.b16 %v308
    %v665 = vunpack.c.l.b16 %v309
    %v666 = vunpack.c.l.b16 %v310
    %v667 = vunpack.c.h.b16 %v310
    %v668 = vunpack.c.l.b16 %v311
    %v669 = vunpack.c.l.b16 %v312
    %v670 = vunpack.c.h.b16 %v312
    %v671 = vunpack.c.l.b16 %v313
    %v672 = vunpack.c.l.b16 %v314
    %v673 = vunpack.c.h.b16 %v314
    %v674 = vunpack.c.l.b16 %v315
    %v675 = vunpack.c.l.b16 %v316
    %v676 = vunpack.c.h.b16 %v316
    %v677 = vunpack.c.l.b16 %v317
    %v678 = vunpack.c.l.b16 %v318
    %v679 = vunpack.c.h.b16 %v318
    %v680 = vunpack.c.l.b16 %v319
    %v681 = vunpack.c.l.b16 %v320
    %v682 = vunpack.c.h.b16 %v320
    %v683 = vunpack.c.l.b16 %v321
    %v684 = vunpack.c.l.b16 %v322
    %v685 = vunpack.c.h.b16 %v322
    %v686 = vunpack.c.l.b16 %v323
    %v687 = vunpack.c.l.b16 %v324
    %v688 = vunpack.c.h.b16 %v324
    %v689 = vunpack.c.l.b16 %v325
    %v690 = vunpack.c.l.b16 %v326
    %v691 = vunpack.c.h.b16 %v326
    %v692 = vunpack.c.l.b16 %v327
    %v693 = vunpack.c.l.b16 %v328
    %v694 = vunpack.c.h.b16 %v328
    %v695 = vunpack.c.l.b16 %v329
    %v696 = vunpack.c.l.b16 %v330
    %v697 = vunpack.c.h.b16 %v330
    %v698 = vunpack.c.l.b16 %v331
    %v699 = vunpack.c.l.b16 %v332
    %v700 = vunpack.c.h.b16 %v332
    %v701 = vunpack.c.l.b16 %v333
    %v702 = vunpack.c.l.b16 %v334
    %v703 = vunpack.c.h.b16 %v334
    %v704 = vunpack.c.l.b16 %v335
    %v705 = vunpack.c.l.b16 %v336
    %v706 = vunpack.c.h.b16 %v336
    %v707 = vunpack.c.l.b16 %v337
    %v708 = vunpack.c.l.b16 %v338
    %v709 = vunpack.c.h.b16 %v338
    %v710 = vunpack.c.l.b16 %v339
    %v711 = vunpack.c.l.b16 %v340
    %v712 = vunpack.c.h.b16 %v340
    %v713 = vunpack.c.l.b16 %v341
    %v714 = vunpack.c.l.b16 %v342
    %v715 = vunpack.c.h.b16 %v342
    %v716 = vunpack.c.l.b16 %v343
    %v717 = vunpack.c.l.b16 %v344
    %v718 = vunpack.c.h.b16 %v344
    %v719 = vunpack.c.l.b16 %v345
    %v720 = vunpack.c.l.b16 %v346
    %v721 = vunpack.c.h.b16 %v346
    %v722 = vunpack.c.l.b16 %v347
    %v723 = vunpack.c.l.b16 %v348
    %v724 = vunpack.c.h.b16 %v348
    %v725 = vunpack.c.l.b16 %v349
    %v726 = vunpack.c.l.b16 %v350
    %v727 = vunpack.c.h.b16 %v350
    %v728 = vunpack.c.l.b16 %v351
    %v729 = vunpack.c.l.b16 %v352
    %v730 = vunpack.c.h.b16 %v352
    %v731 = vunpack.c.l.b16 %v353
    %v732 = vunpack.c.l.b16 %v354
    %v733 = vunpack.c.h.b16 %v354
    %v734 = vunpack.c.l.b16 %v355
    %v735 = vunpack.c.l.b16 %v356
    %v736 = vunpack.c.h.b16 %v356
    %v737 = vunpack.c.l.b16 %v357
    %v738 = vunpack.c.l.b16 %v358
    %v739 = vunpack.c.h.b16 %v358
    %v740 = vunpack.c.l.b16 %v359
    %v741 = vunpack.c.l.b16 %v360
    %v742 = vunpack.c.h.b16 %v360
    %v743 = vunpack.c.l.b16 %v361
    %v744 = vunpack.c.l.b16 %v362
    %v745 = vunpack.c.h.b16 %v362
    %v746 = vunpack.c.l.b16 %v363
    %v747 = vunpack.c.l.b16 %v364
    %v748 = vunpack.c.h.b16 %v364
    %v749 = vunpack.c.l.b16 %v365
    %v750 = vunpack.c.l.b16 %v366
    %v751 = vunpack.c.h.b16 %v366
    %v752 = vunpack.c.l.b16 %v367
    %v753 = vunpack.c.l.b16 %v368
    %v754 = vunpack.c.h.b16 %v368
    %v755 = vunpack.c.l.b16 %v369
    %v756 = vunpack.c.l.b16 %v370
    %v757 = vunpack.c.h.b16 %v370
    %v758 = vunpack.c.l.b16 %v371
    %v759 = vunpack.c.l.b16 %v372
    %v760 = vunpack.c.h.b16 %v372
    %v761 = vunpack.c.l.b16 %v373
    %v762 = vunpack.c.l.b16 %v374
    %v763 = vunpack.c.h.b16 %v374
    %v764 = vunpack.c.l.b16 %v375
    %v765 = vunpack.c.l.b16 %v376
    %v766 = vunpack.c.h.b16 %v376
    %v767 = vunpack.c.l.b16 %v377
    %v768 = vunpack.c.l.b16 %v378
    %v769 = vunpack.c.h.b16 %v378
    %v770 = vunpack.c.l.b16 %v379
    %v771 = vunpack.c.l.b16 %v380
    %v772 = vunpack.c.h.b16 %v380
    %v773 = vunpack.c.l.b16 %v381
    %v774 = vunpack.c.l.b16 %v382
    %v775 = vunpack.c.h.b16 %v382
    %v776 = vunpack.c.l.b16 %v383
    %v777 = vpack.c.b16 %v549, %v546
    %v778 = vpack.c.b16 %v550, %v547
    %v779 = vpack.c.b16 %v551, %v548
    %v780 = vpack.c.b16 %v555, %v552
    %v781 = vpack.c.b16 %v556, %v553
    %v782 = vpack.c.b16 %v557, %v554
    %v783 = vpack.c.b16 %v561, %v558
    %v784 = vpack.c.b16 %v562, %v559
    %v785 = vpack.c.b16 %v563, %v560
    %v786 = vpack.c.b16 %v567, %v564
    %v787 = vpack.c.b16 %v568, %v565
    %v788 = vpack.c.b16 %v569, %v566
    %v789 = vpack.c.b16 %v573, %v570
    %v790 = vpack.c.b16 %v574, %v571
    %v791 = vpack.c.b16 %v575, %v572
    %v792 = vpack.c.b16 %v579, %v576
    %v793 = vpack.c.b16 %v580, %v577
    %v794 = vpack.c.b16 %v581, %v578
    %v795 = vpack.c.b16 %v585, %v582
    %v796 = vpack.c.b16 %v586, %v583
    %v797 = vpack.c.b16 %v587, %v584
    %v798 = vpack.c.b16 %v591, %v588
    %v799 = vpack.c.b16 %v592, %v589
    %v800 = vpack.c.b16 %v593, %v590
    %v801 = vpack.c.b16 %v597, %v594
    %v802 = vpack.c.b16 %v598, %v595
    %v803 = vpack.c.b16 %v599, %v596
    %v804 = vpack.c.b16 %v603, %v600
    %v805 = vpack.c.b16 %v604, %v601
    %v806 = vpack.c.b16 %v605, %v602
    %v807 = vpack.c.b16 %v609, %v606
    %v808 = vpack.c.b16 %v610, %v607
    %v809 = vpack.c.b16 %v611, %v608
    %v810 = vpack.c.b16 %v615, %v612
    %v811 = vpack.c.b16 %v616, %v613
    %v812 = vpack.c.b16 %v617, %v614
    %v813 = vpack.c.b16 %v621, %v618
    %v814 = vpack.c.b16 %v622, %v619
    %v815 = vpack.c.b16 %v623, %v620
    %v816 = vpack.c.b16 %v627, %v624
    %v817 = vpack.c.b16 %v628, %v625
    %v818 = vpack.c.b16 %v629, %v626
    %v819 = vpack.c.b16 %v633, %v630
    %v820 = vpack.c.b16 %v634, %v631
    %v821 = vpack.c.b16 %v635, %v632
    %v822 = vpack.c.b16 %v639, %v636
    %v823 = vpack.c.b16 %v640, %v637
    %v824 = vpack.c.b16 %v641, %v638
    %v825 = vpack.c.b16 %v645, %v642
    %v826 = vpack.c.b16 %v646, %v643
    %v827 = vpack.c.b16 %v647, %v644
    %v828 = vpack.c.b16 %v651, %v648
    %v829 = vpack.c.b16 %v652, %v649
    %v830 = vpack.c.b16 %v653, %v650
    %v831 = vpack.c.b16 %v657, %v654
    %v832 = vpack.c.b16 %v658, %v655
    %v833 = vpack.c.b16 %v659, %v656
    %v834 = vpack.c.b16 %v663, %v660
    %v835 = vpack.c.b16 %v664, %v661
    %v836 = vpack.c.b16 %v665, %v662
    %v837 = vpack.c.b16 %v669, %v666
    %v838 = vpack.c.b16 %v670, %v667
    %v839 = vpack.c.b16 %v671, %v668
    %v840 = vpack.c.b16 %v675, %v672
    %v841 = vpack.c.b16 %v676, %v673
    %v842 = vpack.c.b16 %v677, %v674
    %v843 = vpack.c.b16 %v681, %v678
    %v844 = vpack.c.b16 %v682, %v679
    %v845 = vpack.c.b16 %v683, %v680
    %v846 = vpack.c.b16 %v687, %v684
    %v847 = vpack.c.b16 %v688, %v685
    %v848 = vpack.c.b16 %v689, %v686
    %v849 = vpack.c.b16 %v693, %v690
    %v850 = vpack.c.b16 %v694, %v691
    %v851 = vpack.c.b16 %v695, %v692
    %v852 = vpack.c.b16 %v699, %v696
    %v853 = vpack.c.b16 %v700, %v697
    %v854 = vpack.c.b16 %v701, %v698
    %v855 = vpack.c.b16 %v705, %v702
    %v856 = vpack.c.b16 %v706, %v703
    %v857 = vpack.c.b16 %v707, %v704
    %v858 = vpack.c.b16 %v711, %v708
    %v859 = vpack.c.b16 %v712, %v709
    %v860 = vpack.c.b16 %v713, %v710
    %v861 = vpack.c.b16 %v717, %v714
    %v862 = vpack.c.b16 %v718, %v715
    %v863 = vpack.c.b16 %v719, %v716
    %v864 = vpack.c.b16 %v723, %v720
    %v865 = vpack.c.b16 %v724, %v721
    %v866 = vpack.c.b16 %v725, %v722
    %v867 = vpack.c.b16 %v729, %v726
    %v868 = vpack.c.b16 %v730, %v727
    %v869 = vpack.c.b16 %v731, %v728
    %v870 = vpack.c.b16 %v735, %v732
    %v871 = vpack.c.b16 %v736, %v733
    %v872 = vpack.c.b16 %v737, %v734
    %v873 = vpack.c.b16 %v741, %v738
    %v874 = vpack.c.b16 %v742, %v739
    %v875 = vpack.c.b16 %v743, %v740
    %v876 = vpack.c.b16 %v747, %v744
    %v877 = vpack.c.b16 %v748, %v745
    %v878 = vpack.c.b16 %v749, %v746
    %v879 = vpack.c.b16 %v753, %v750
    %v880 = vpack.c.b16 %v754, %v751
    %v881 = vpack.c.b16 %v755, %v752
    %v882 = vpack.c.b16 %v759, %v756
    %v883 = vpack.c.b16 %v760, %v757
    %v884 = vpack.c.b16 %v761, %v758
    %v885 = vpack.c.b16 %v765, %v762
    %v886 = vpack.c.b16 %v766, %v763
    %v887 = vpack.c.b16 %v767, %v764
    %v888 = vpack.c.b16 %v771, %v768
    %v889 = vpack.c.b16 %v772, %v769
    %v890 = vpack.c.b16 %v773, %v770
    %v891 = vpack.c.b16 %v774, %v774
    %v892 = vpack.c.b16 %v775, %v775
    %v893 = vpack.c.b16 %v776, %v776
    %vm1008 = vcmask 818176
    %v1010 = vsel %vm1008, %v229, 0
    %v1013 = vsel %vm129, %v891, 0
    %v1016 = vsel %vm129, %v892, 0
    %v1019 = vsel %vm129, %v893, 0
    %1021 = vmatpush.bf16.msra.mxu0 %v798
    %1022 = vmatpush.bf16.msra.mxu0 %v795
    %1023 = vmatpush.bf16.msra.mxu0 %v792
    %1024 = vmatpush.bf16.msra.mxu0 %v789
    %1025 = vmatpush.bf16.msra.mxu0 %v786
    %1026 = vmatpush.bf16.msra.mxu0 %v783
    %1027 = vmatpush.bf16.msra.mxu0 %v780
    %1028 = vmatpush.bf16.msra.mxu0 %v777
    %1029 = vmatmul.bf16.gmra.mxu0 %v225
    %v1030 = vpop.f32.mrf.mxu0
    %v1031 = vadd.f32 %v386, %v1030
    %v1032 = vpop.f32.mrf.mxu0
    %v1033 = vadd.f32 %v386, %v1032
    %1034 = vdwg.mxu0
    %1035 = vmatpush.bf16.msra.mxu0 %v822
    %1036 = vmatpush.bf16.msra.mxu0 %v819
    %1037 = vmatpush.bf16.msra.mxu0 %v816
    %1038 = vmatpush.bf16.msra.mxu0 %v813
    %1039 = vmatpush.bf16.msra.mxu0 %v810
    %1040 = vmatpush.bf16.msra.mxu0 %v807
    %1041 = vmatpush.bf16.msra.mxu0 %v804
    %1042 = vmatpush.bf16.msra.mxu0 %v801
    %1043 = vmatmul.bf16.gmra.mxu0 %v226
    %v1044 = vpop.f32.mrf.mxu0
    %v1045 = vadd.f32 %v1031, %v1044
    %v1046 = vpop.f32.mrf.mxu0
    %v1047 = vadd.f32 %v1033, %v1046
    %1048 = vdwg.mxu0
    %1049 = vmatpush.bf16.msra.mxu0 %v846
    %1050 = vmatpush.bf16.msra.mxu0 %v843
    %1051 = vmatpush.bf16.msra.mxu0 %v840
    %1052 = vmatpush.bf16.msra.mxu0 %v837
    %1053 = vmatpush.bf16.msra.mxu0 %v834
    %1054 = vmatpush.bf16.msra.mxu0 %v831
    %1055 = vmatpush.bf16.msra.mxu0 %v828
    %1056 = vmatpush.bf16.msra.mxu0 %v825
    %1057 = vmatmul.bf16.gmra.mxu0 %v227
    %v1058 = vpop.f32.mrf.mxu0
    %v1059 = vadd.f32 %v1045, %v1058
    %v1060 = vpop.f32.mrf.mxu0
    %v1061 = vadd.f32 %v1047, %v1060
    %1062 = vdwg.mxu0
    %1063 = vmatpush.bf16.msra.mxu0 %v870
    %1064 = vmatpush.bf16.msra.mxu0 %v867
    %1065 = vmatpush.bf16.msra.mxu0 %v864
    %1066 = vmatpush.bf16.msra.mxu0 %v861
    %1067 = vmatpush.bf16.msra.mxu0 %v858
    %1068 = vmatpush.bf16.msra.mxu0 %v855
    %1069 = vmatpush.bf16.msra.mxu0 %v852
    %1070 = vmatpush.bf16.msra.mxu0 %v849
    %1071 = vmatmul.bf16.gmra.mxu0 %v228
    %v1072 = vpop.f32.mrf.mxu0
    %v1073 = vadd.f32 %v1059, %v1072
    %v1074 = vpop.f32.mrf.mxu0
    %v1075 = vadd.f32 %v1061, %v1074
    %1076 = vdwg.mxu0
    %1077 = vmatpush.bf16.msra.mxu0 0
    %1078 = vmatpush.bf16.msra.mxu0 %v1013
    %1079 = vmatpush.bf16.msra.mxu0 %v888
    %1080 = vmatpush.bf16.msra.mxu0 %v885
    %1081 = vmatpush.bf16.msra.mxu0 %v882
    %1082 = vmatpush.bf16.msra.mxu0 %v879
    %1083 = vmatpush.bf16.msra.mxu0 %v876
    %1084 = vmatpush.bf16.msra.mxu0 %v873
    %1085 = vmatmul.bf16.gmra.mxu0 %v1010
    %v1086 = vpop.f32.mrf.mxu0
    %v1087 = vadd.f32 %v1073, %v1086
    %v1088 = vpop.f32.mrf.mxu0
    %v1089 = vadd.f32 %v1075, %v1088
    %1090 = vdwg.mxu0
    %1091 = vmatpush.bf16.msra.mxu0 %v799
    %1092 = vmatpush.bf16.msra.mxu0 %v796
    %1093 = vmatpush.bf16.msra.mxu0 %v793
    %1094 = vmatpush.bf16.msra.mxu0 %v790
    %1095 = vmatpush.bf16.msra.mxu0 %v787
    %1096 = vmatpush.bf16.msra.mxu0 %v784
    %1097 = vmatpush.bf16.msra.mxu0 %v781
    %1098 = vmatpush.bf16.msra.mxu0 %v778
    %1099 = vmatmul.bf16.gmra.mxu0 %v225
    %v1100 = vpop.f32.mrf.mxu0
    %v1101 = vadd.f32 %v387, %v1100
    %v1102 = vpop.f32.mrf.mxu0
    %v1103 = vadd.f32 %v387, %v1102
    %1104 = vdwg.mxu0
    %1105 = vmatpush.bf16.msra.mxu0 %v823
    %1106 = vmatpush.bf16.msra.mxu0 %v820
    %1107 = vmatpush.bf16.msra.mxu0 %v817
    %1108 = vmatpush.bf16.msra.mxu0 %v814
    %1109 = vmatpush.bf16.msra.mxu0 %v811
    %1110 = vmatpush.bf16.msra.mxu0 %v808
    %1111 = vmatpush.bf16.msra.mxu0 %v805
    %1112 = vmatpush.bf16.msra.mxu0 %v802
    %1113 = vmatmul.bf16.gmra.mxu0 %v226
    %v1114 = vpop.f32.mrf.mxu0
    %v1115 = vadd.f32 %v1101, %v1114
    %v1116 = vpop.f32.mrf.mxu0
    %v1117 = vadd.f32 %v1103, %v1116
    %1118 = vdwg.mxu0
    %1119 = vmatpush.bf16.msra.mxu0 %v847
    %1120 = vmatpush.bf16.msra.mxu0 %v844
    %1121 = vmatpush.bf16.msra.mxu0 %v841
    %1122 = vmatpush.bf16.msra.mxu0 %v838
    %1123 = vmatpush.bf16.msra.mxu0 %v835
    %1124 = vmatpush.bf16.msra.mxu0 %v832
    %1125 = vmatpush.bf16.msra.mxu0 %v829
    %1126 = vmatpush.bf16.msra.mxu0 %v826
    %1127 = vmatmul.bf16.gmra.mxu0 %v227
    %v1128 = vpop.f32.mrf.mxu0
    %v1129 = vadd.f32 %v1115, %v1128
    %v1130 = vpop.f32.mrf.mxu0
    %v1131 = vadd.f32 %v1117, %v1130
    %1132 = vdwg.mxu0
    %1133 = vmatpush.bf16.msra.mxu0 %v871
    %1134 = vmatpush.bf16.msra.mxu0 %v868
    %1135 = vmatpush.bf16.msra.mxu0 %v865
    %1136 = vmatpush.bf16.msra.mxu0 %v862
    %1137 = vmatpush.bf16.msra.mxu0 %v859
    %1138 = vmatpush.bf16.msra.mxu0 %v856
    %1139 = vmatpush.bf16.msra.mxu0 %v853
    %1140 = vmatpush.bf16.msra.mxu0 %v850
    %1141 = vmatmul.bf16.gmra.mxu0 %v228
    %v1142 = vpop.f32.mrf.mxu0
    %v1143 = vadd.f32 %v1129, %v1142
    %v1144 = vpop.f32.mrf.mxu0
    %v1145 = vadd.f32 %v1131, %v1144
    %1146 = vdwg.mxu0
    %1147 = vmatpush.bf16.msra.mxu0 0
    %1148 = vmatpush.bf16.msra.mxu0 %v1016
    %1149 = vmatpush.bf16.msra.mxu0 %v889
    %1150 = vmatpush.bf16.msra.mxu0 %v886
    %1151 = vmatpush.bf16.msra.mxu0 %v883
    %1152 = vmatpush.bf16.msra.mxu0 %v880
    %1153 = vmatpush.bf16.msra.mxu0 %v877
    %1154 = vmatpush.bf16.msra.mxu0 %v874
    %1155 = vmatmul.bf16.gmra.mxu0 %v1010
    %v1156 = vpop.f32.mrf.mxu0
    %v1157 = vadd.f32 %v1143, %v1156
    %v1158 = vpop.f32.mrf.mxu0
    %v1159 = vadd.f32 %v1145, %v1158
    %1160 = vdwg.mxu0
    %1161 = vmatpush.bf16.msra.mxu0 %v800
    %1162 = vmatpush.bf16.msra.mxu0 %v797
    %1163 = vmatpush.bf16.msra.mxu0 %v794
    %1164 = vmatpush.bf16.msra.mxu0 %v791
    %1165 = vmatpush.bf16.msra.mxu0 %v788
    %1166 = vmatpush.bf16.msra.mxu0 %v785
    %1167 = vmatpush.bf16.msra.mxu0 %v782
    %1168 = vmatpush.bf16.msra.mxu0 %v779
    %1169 = vmatmul.bf16.gmra.mxu0 %v225
    %v1170 = vpop.f32.mrf.mxu0
    %v1171 = vadd.f32 %v388, %v1170
    %v1172 = vpop.f32.mrf.mxu0
    %v1173 = vadd.f32 %v388, %v1172
    %1174 = vdwg.mxu0
    %1175 = vmatpush.bf16.msra.mxu0 %v824
    %1176 = vmatpush.bf16.msra.mxu0 %v821
    %1177 = vmatpush.bf16.msra.mxu0 %v818
    %1178 = vmatpush.bf16.msra.mxu0 %v815
    %1179 = vmatpush.bf16.msra.mxu0 %v812
    %1180 = vmatpush.bf16.msra.mxu0 %v809
    %1181 = vmatpush.bf16.msra.mxu0 %v806
    %1182 = vmatpush.bf16.msra.mxu0 %v803
    %1183 = vmatmul.bf16.gmra.mxu0 %v226
    %v1184 = vpop.f32.mrf.mxu0
    %v1185 = vadd.f32 %v1171, %v1184
    %v1186 = vpop.f32.mrf.mxu0
    %v1187 = vadd.f32 %v1173, %v1186
    %1188 = vdwg.mxu0
    %1189 = vmatpush.bf16.msra.mxu0 %v848
    %1190 = vmatpush.bf16.msra.mxu0 %v845
    %1191 = vmatpush.bf16.msra.mxu0 %v842
    %1192 = vmatpush.bf16.msra.mxu0 %v839
    %1193 = vmatpush.bf16.msra.mxu0 %v836
    %1194 = vmatpush.bf16.msra.mxu0 %v833
    %1195 = vmatpush.bf16.msra.mxu0 %v830
    %1196 = vmatpush.bf16.msra.mxu0 %v827
    %1197 = vmatmul.bf16.gmra.mxu0 %v227
    %v1198 = vpop.f32.mrf.mxu0
    %v1199 = vadd.f32 %v1185, %v1198
    %v1200 = vpop.f32.mrf.mxu0
    %v1201 = vadd.f32 %v1187, %v1200
    %1202 = vdwg.mxu0
    %1203 = vmatpush.bf16.msra.mxu0 %v872
    %1204 = vmatpush.bf16.msra.mxu0 %v869
    %1205 = vmatpush.bf16.msra.mxu0 %v866
    %1206 = vmatpush.bf16.msra.mxu0 %v863
    %1207 = vmatpush.bf16.msra.mxu0 %v860
    %1208 = vmatpush.bf16.msra.mxu0 %v857
    %1209 = vmatpush.bf16.msra.mxu0 %v854
    %1210 = vmatpush.bf16.msra.mxu0 %v851
    %1211 = vmatmul.bf16.gmra.mxu0 %v228
    %v1212 = vpop.f32.mrf.mxu0
    %v1213 = vadd.f32 %v1199, %v1212
    %v1214 = vpop.f32.mrf.mxu0
    %v1215 = vadd.f32 %v1201, %v1214
    %1216 = vdwg.mxu0
    %1217 = vmatpush.bf16.msra.mxu0 0
    %1218 = vmatpush.bf16.msra.mxu0 %v1019
    %1219 = vmatpush.bf16.msra.mxu0 %v890
    %1220 = vmatpush.bf16.msra.mxu0 %v887
    %1221 = vmatpush.bf16.msra.mxu0 %v884
    %1222 = vmatpush.bf16.msra.mxu0 %v881
    %1223 = vmatpush.bf16.msra.mxu0 %v878
    %1224 = vmatpush.bf16.msra.mxu0 %v875
    %1225 = vmatmul.bf16.gmra.mxu0 %v1010
    %v1226 = vpop.f32.mrf.mxu0
    %v1227 = vadd.f32 %v1213, %v1226
    %v1228 = vpop.f32.mrf.mxu0
    %v1229 = vadd.f32 %v1215, %v1228
    %1230 = vdwg.mxu0
    %v1231 = vmax.f32 %v1087, 0.0
    %v1232 = vmax.f32 %v1157, 0.0
    %v1233 = vmax.f32 %v1227, 0.0
    %v1234 = vmax.f32 %v1089, 0.0
    %v1235 = vmax.f32 %v1159, 0.0
    %v1236 = vmax.f32 %v1229, 0.0
    %v1237 = vld [vmem:[%s5] sm:$0x7]
    %v1239 = vperm.slane %v1237, 0
    %v1240 = vperm.slane %v1237, 1
    %v1241 = vperm.slane %v1237, 2
    %v1245 = vmul.f32 %v1231, %v1239
    %v1246 = vmul.f32 %v1232, %v1240
    %v1247 = vmul.f32 %v1233, %v1241
    %v1248 = vmul.f32 %v1234, %v1239
    %v1249 = vmul.f32 %v1235, %v1240
    %v1250 = vmul.f32 %v1236, %v1241
    %v1251 = vadd.f32 %v1245, %v1246
    %vm1252 = vcmask 408576
    %v1253 = vsel %vm1252, %v1247, 0.0
    %v1254 = vadd.f32 %v1251, %v1253
    %1255 = vadd.xlane.f32.xlu0 %v1254
    %v1256 = vpop.xlane.xlu0 %1255
    %v1257 = vadd.f32 %v1248, %v1249
    %v1258 = vsel %vm1252, %v1250, 0.0
    %v1259 = vadd.f32 %v1257, %v1258
    %1260 = vadd.xlane.f32.xlu0 %v1259
    %v1261 = vpop.xlane.xlu0 %1260
    %v1262 = vld [vmem:[#allocation2] sm:$0x1]
    %1264 = vset.pattern.permute.xlu0 0
    %1265 = vperm.xlu0 %1264, %v1262
    %v1266 = vpop.permute.xlu0 %1265
    %v1268 = vperm.slane %v1266, 0
    %v1269 = vadd.f32 %v1256, %v1268
    %v1270 = vadd.f32 %v1261, %v1268
    %v1273 = vlaneseq
    %v1274 = vand.u32 %v1273, 127
    %v1275 = vperm.slane %v1269, %v1274
    %v1276 = vadd.s32 %v1274, 4294967288
    %v1277 = vperm.slane %v1270, %v1276
    %vm1278 = vcmask 130112
    %v1279 = vsel %vm1278, %v1277, %v1275
    %vm1281 = vcmask 122880
    %1282 = vst.msk [vmem:[#allocation3] sm:$0x1] %vm1281, %v1279
    // Predicated region
    $region30: #{tpu_custom_call.1} parent=1 // pred_check
      _
    $region31: #{tpu_custom_call.1} parent=1 // pred_check_branch
      %1284 = sbr.rel (0) target = $region33
    $region32: #{tpu_custom_call.1} parent=1 // pred_region
      %1286 = vsyncadd [#allocation4], 0
      %s1288 = sshll.u32 [#allocation3], 4
      %s1289 = int_to_ptr.vmem [resolvable:$true] %s1288
      %s1290 = sshll.u32 %s7, 4
      %s1291 = int_to_ptr.hbm [resolvable:$true] %s1290
      %1293 = dma.vmem_to_hbm [thread:$0]  %s1289, 16, %s1291, [#allocation4]
    $region33: #{tpu_custom_call.1} parent=1 // pred_fallthru
      _
    // Predicated region
    $region34: #{tpu_custom_call.1} parent=1 // pred_check
      _
    $region35: #{tpu_custom_call.1} parent=1 // pred_check_branch
      %1295 = sbr.rel (0) target = $region37
    $region36: #{tpu_custom_call.1} parent=1 // pred_region
      %1297 = dma.done [#allocation4], 16
    $region37: #{tpu_custom_call.1} parent=1 // pred_fallthru
      _
    %1298 = vsyncpa [#allocation4], 1

</llo_original>
